<compile_context>
chip_gen: v7x
topology: tpu7x:2x2x1
jax: 0.10.0
libtpu: 0.0.40
codegen_flags: <defaults>
</compile_context>

<pallas_src>
import functools

import jax
import jax.numpy as jnp
import numpy as np
from jax.experimental import pallas as pl
from jax.experimental.pallas import tpu as pltpu


def _gating_kernel(wc_ref, shift_ref, x_ref, wfc_ref, bfc_ref, o_ref, *,
                   n_cin, n_cmid, inv_cell):
    # wc_ref   : SMEM (C_mid*C_in,)    BN-scale-folded conv weight, flat index m*C_in + c
    # shift_ref: SMEM (C_mid,)         folded conv-bias + BN shift
    # x_ref    : VMEM (TN, C_in, Q, P) batch block; spatial = (within-cell q, pool-cell p)
    # wfc_ref  : VMEM (C_mid, P, out)  fc weight (no in-kernel flatten needed)
    # bfc_ref  : VMEM (1, out)
    # o_ref    : VMEM (TN, out)
    out = bfc_ref[...]                                    # (1, out) -> broadcasts to (TN, out)
    for m in range(n_cmid):
        # 1x1x1 conv as unrolled VPU broadcast-FMAs (MXU contraction dim would be ~3% used).
        acc = wc_ref[m * n_cin] * x_ref[:, 0, :, :]       # (TN, Q, P)
        for c in range(1, n_cin):
            acc = acc + wc_ref[m * n_cin + c] * x_ref[:, c, :, :]
        h = jnp.maximum(acc + shift_ref[m], 0.0)          # BN(eval) shift + ReLU
        pooled = h.sum(axis=1) * inv_cell                 # adaptive avg pool -> (TN, P)
        out = out + jnp.dot(pooled, wfc_ref[m],           # (TN, P) @ (P, out)
                            preferred_element_type=jnp.float32)
    o_ref[...] = out


def unet_gating_signal3(x, wc, bc, bn_gamma, bn_beta, bn_mean, bn_var, wfc, bfc,
                        *, bn_eps=1e-5):
    """x: (N, C_in, D, H, W) float32.  Returns (N, out_size)."""
    N, C_in, D, H, W = x.shape
    C_mid = wc.shape[0]
    out_size = wfc.shape[0]
    fD = fH = fW = 4
    assert D % fD == 0 and H % fH == 0 and W % fW == 0, (
        "AdaptiveAvgPool3d((4,4,4)) with uneven bins is not supported")
    D4, H4, W4 = D // fD, H // fH, W // fW
    P = fD * fH * fW                       # 64 pooled cells
    Q = D4 * H4 * W4                       # spatial elements per pooled cell

    # TODO(synk): for large C_in (>= ~32) switch the conv back to an MXU dot path; the
    # module uses in_size // 2 mid channels so C_in stays small here.
    assert C_in <= 32, "unrolled VPU conv path expects small C_in"

    # Fold eval-mode BatchNorm (+ conv bias) into the conv weight / a per-channel shift.
    s = bn_gamma / jnp.sqrt(bn_var + bn_eps)                           # (C_mid,)
    wc_folded = (s[:, None] * wc).astype(jnp.float32).reshape(-1)      # (C_mid*C_in,)
    shift = (bn_beta + s * (bc - bn_mean)).astype(jnp.float32)         # (C_mid,)

    # Spatial permutation: d = do*D4 + di (same for h, w); order the flat spatial axis as
    # (q = di*H4*W4 + hi*W4 + wi, p = do*16 + ho*4 + wo) so pooling is a sum over q.
    x8 = x.reshape(N, C_in, fD, D4, fH, H4, fW, W4)
    x_perm = jnp.transpose(x8, (0, 1, 3, 5, 7, 2, 4, 6))
    x_perm = x_perm.reshape(N, C_in, Q, P).astype(jnp.float32)

    # fc weight reshaped to (C_mid, P, out): PyTorch Linear flat index is m*P + p.
    wfc3 = wfc.T.reshape(C_mid, P, out_size).astype(jnp.float32)
    bfc2 = bfc.reshape(1, out_size).astype(jnp.float32)

    # Batch block: several batch elements per grid step (amortize per-step overhead,
    # bigger DMAs, batched stores).  TN must keep blocks evenly dividing N.
    TN = 8 if (N > 8 and N % 8 == 0) else N
    NB = N // TN

    kernel = functools.partial(_gating_kernel, n_cin=C_in, n_cmid=C_mid,
                               inv_cell=float(1.0 / Q))

    x_block_bytes = TN * C_in * Q * P * 4
    const_bytes = (C_mid * P * out_size + out_size) * 4
    vmem_bytes = int(min(max(4 * x_block_bytes + 2 * const_bytes, 16 << 20), 32 << 20))

    out = pl.pallas_call(
        kernel,
        out_shape=jax.ShapeDtypeStruct((N, out_size), jnp.float32),
        grid_spec=pltpu.PrefetchScalarGridSpec(
            num_scalar_prefetch=0,
            grid=(NB,),
            in_specs=[
                pl.BlockSpec(memory_space=pltpu.MemorySpace.SMEM),          # wc_folded
                pl.BlockSpec(memory_space=pltpu.MemorySpace.SMEM),          # shift
                pl.BlockSpec((TN, C_in, Q, P), lambda n: (n, 0, 0, 0)),     # x
                pl.BlockSpec((C_mid, P, out_size), lambda n: (0, 0, 0)),    # wfc3
                pl.BlockSpec((1, out_size), lambda n: (0, 0)),              # bfc
            ],
            out_specs=pl.BlockSpec((TN, out_size), lambda n: (n, 0)),
        ),
        compiler_params=pltpu.CompilerParams(
            dimension_semantics=("parallel",),
            vmem_limit_bytes=vmem_bytes),
    )(wc_folded, shift, x_perm, wfc3, bfc2)

    return out


def _reference(x, wc, bc, bn_gamma, bn_beta, bn_mean, bn_var, wfc, bfc, bn_eps=1e-5):
    N, C_in, D, H, W = x.shape
    C_mid = wc.shape[0]
    conv = jnp.einsum("ncdhw,mc->nmdhw", x, wc) + bc[None, :, None, None, None]
    bn = (conv - bn_mean[None, :, None, None, None]) / jnp.sqrt(
        bn_var[None, :, None, None, None] + bn_eps)
    bn = bn * bn_gamma[None, :, None, None, None] + bn_beta[None, :, None, None, None]
    h = jnp.maximum(bn, 0.0)
    pooled = h.reshape(N, C_mid, 4, D // 4, 4, H // 4, 4, W // 4).mean(axis=(3, 5, 7))
    flat = pooled.reshape(N, -1)
    return flat @ wfc.T + bfc[None, :]


if __name__ == "__main__":
    # Small shapes consistent with the module: in_size=4 -> C_mid=2, out_size=8,
    # spatial 8x8x8 (divisible by the (4,4,4) adaptive-pool output).
    N, in_size, out_size = 2, 4, 8
    D = H = W = 8
    C_mid = in_size // 2

    key = jax.random.PRNGKey(0)
    keys = jax.random.split(key, 8)
    x = jax.random.normal(keys[0], (N, in_size, D, H, W), dtype=jnp.float32)

    # Deterministic parameter init (kaiming-normal-ish scales).
    wc = jax.random.normal(keys[1], (C_mid, in_size), dtype=jnp.float32) * (
        2.0 / in_size) ** 0.5
    bc = jax.random.normal(keys[2], (C_mid,), dtype=jnp.float32) * 0.1
    bn_gamma = 1.0 + 0.02 * jax.random.normal(keys[3], (C_mid,), dtype=jnp.float32)
    bn_beta = jnp.zeros((C_mid,), dtype=jnp.float32)
    bn_mean = 0.1 * jax.random.normal(keys[4], (C_mid,), dtype=jnp.float32)
    bn_var = 1.0 + 0.05 * jax.nn.softplus(
        jax.random.normal(keys[5], (C_mid,), dtype=jnp.float32))
    fc_in = C_mid * 4 * 4 * 4
    wfc = jax.random.normal(keys[6], (out_size, fc_in), dtype=jnp.float32) * (
        2.0 / fc_in) ** 0.5
    bfc = jax.random.normal(keys[7], (out_size,), dtype=jnp.float32) * 0.1

    out = unet_gating_signal3(x, wc, bc, bn_gamma, bn_beta, bn_mean, bn_var, wfc, bfc)
    out = jax.block_until_ready(out)

    ref = _reference(x, wc, bc, bn_gamma, bn_beta, bn_mean, bn_var, wfc, bfc)
    np.testing.assert_allclose(np.asarray(out), np.asarray(ref), rtol=1e-4, atol=1e-4)

    print("KERNEL_OK")
</pallas_src>

<mosaic_0001>
module attributes {stable_mosaic.version = 11 : i64} {
  func.func @_gating_kernel(%arg0: i32, %arg1: memref<8xf32, #tpu.memory_space<smem>>, %arg2: memref<2xf32, #tpu.memory_space<smem>>, %arg3: memref<2x4x8x64xf32, #tpu.memory_space<vmem>>, %arg4: memref<2x64x8xf32, #tpu.memory_space<vmem>>, %arg5: memref<1x8xf32, #tpu.memory_space<vmem>>, %arg6: memref<2x8xf32, #tpu.memory_space<vmem>>) attributes {dimension_semantics = [#tpu.dimension_semantics<parallel>], iteration_bounds = array<i64: 1>, scalar_prefetch = 0 : i64, scratch_operands = 0 : i64, tpu.core_type = #tpu.core_type<tc>, window_params = [{transform_indices = @transform_0, window_bounds = array<i64: 8>}, {transform_indices = @transform_1, window_bounds = array<i64: 2>}, {transform_indices = @transform_2, window_bounds = array<i64: 2, 4, 8, 64>}, {pipeline_mode = #tpu.pipeline_mode<synchronous>, transform_indices = @transform_3, window_bounds = array<i64: 2, 64, 8>}, {pipeline_mode = #tpu.pipeline_mode<synchronous>, transform_indices = @transform_4, window_bounds = array<i64: 1, 8>}, {transform_indices = @transform_5, window_bounds = array<i64: 2, 8>}]} {
    %c0 = arith.constant 0 : index
    %c0_0 = arith.constant 0 : index
    %0 = vector.load %arg5[%c0, %c0_0] : memref<1x8xf32, #tpu.memory_space<vmem>>, vector<1x8xf32>
    %c0_1 = arith.constant 0 : index
    %1 = memref.load %arg1[%c0_1] : memref<8xf32, #tpu.memory_space<smem>>
    %c0_2 = arith.constant 0 : index
    %c0_3 = arith.constant 0 : index
    %c0_4 = arith.constant 0 : index
    %c0_5 = arith.constant 0 : index
    %2 = vector.load %arg3[%c0_2, %c0_3, %c0_4, %c0_5] : memref<2x4x8x64xf32, #tpu.memory_space<vmem>>, vector<2x1x8x64xf32>
    %3 = vector.shape_cast %2 : vector<2x1x8x64xf32> to vector<2x8x64xf32>
    %4 = vector.broadcast %1 : f32 to vector<2x8x64xf32>
    %5 = arith.mulf %4, %3 : vector<2x8x64xf32>
    %c1 = arith.constant 1 : index
    %6 = memref.load %arg1[%c1] : memref<8xf32, #tpu.memory_space<smem>>
    %c0_6 = arith.constant 0 : index
    %c1_7 = arith.constant 1 : index
    %c0_8 = arith.constant 0 : index
    %c0_9 = arith.constant 0 : index
    %7 = vector.load %arg3[%c0_6, %c1_7, %c0_8, %c0_9] : memref<2x4x8x64xf32, #tpu.memory_space<vmem>>, vector<2x1x8x64xf32>
    %8 = vector.shape_cast %7 : vector<2x1x8x64xf32> to vector<2x8x64xf32>
    %9 = vector.broadcast %6 : f32 to vector<2x8x64xf32>
    %10 = arith.mulf %9, %8 : vector<2x8x64xf32>
    %11 = arith.addf %5, %10 : vector<2x8x64xf32>
    %c2 = arith.constant 2 : index
    %12 = memref.load %arg1[%c2] : memref<8xf32, #tpu.memory_space<smem>>
    %c0_10 = arith.constant 0 : index
    %c2_11 = arith.constant 2 : index
    %c0_12 = arith.constant 0 : index
    %c0_13 = arith.constant 0 : index
    %13 = vector.load %arg3[%c0_10, %c2_11, %c0_12, %c0_13] : memref<2x4x8x64xf32, #tpu.memory_space<vmem>>, vector<2x1x8x64xf32>
    %14 = vector.shape_cast %13 : vector<2x1x8x64xf32> to vector<2x8x64xf32>
    %15 = vector.broadcast %12 : f32 to vector<2x8x64xf32>
    %16 = arith.mulf %15, %14 : vector<2x8x64xf32>
    %17 = arith.addf %11, %16 : vector<2x8x64xf32>
    %c3 = arith.constant 3 : index
    %18 = memref.load %arg1[%c3] : memref<8xf32, #tpu.memory_space<smem>>
    %c0_14 = arith.constant 0 : index
    %c3_15 = arith.constant 3 : index
    %c0_16 = arith.constant 0 : index
    %c0_17 = arith.constant 0 : index
    %19 = vector.load %arg3[%c0_14, %c3_15, %c0_16, %c0_17] : memref<2x4x8x64xf32, #tpu.memory_space<vmem>>, vector<2x1x8x64xf32>
    %20 = vector.shape_cast %19 : vector<2x1x8x64xf32> to vector<2x8x64xf32>
    %21 = vector.broadcast %18 : f32 to vector<2x8x64xf32>
    %22 = arith.mulf %21, %20 : vector<2x8x64xf32>
    %23 = arith.addf %17, %22 : vector<2x8x64xf32>
    %c0_18 = arith.constant 0 : index
    %24 = memref.load %arg2[%c0_18] : memref<2xf32, #tpu.memory_space<smem>>
    %25 = vector.broadcast %24 : f32 to vector<2x8x64xf32>
    %26 = arith.addf %23, %25 : vector<2x8x64xf32>
    %cst = arith.constant 0.000000e+00 : f32
    %27 = vector.broadcast %cst : f32 to vector<2x8x64xf32>
    %28 = arith.maximumf %26, %27 : vector<2x8x64xf32>
    %cst_19 = arith.constant dense<0.000000e+00> : vector<2x64xf32>
    %29 = vector.multi_reduction <add>, %28, %cst_19 [1] : vector<2x8x64xf32> to vector<2x64xf32>
    %cst_20 = arith.constant 1.250000e-01 : f32
    %30 = vector.broadcast %cst_20 : f32 to vector<2x64xf32>
    %31 = arith.mulf %29, %30 : vector<2x64xf32>
    %c0_21 = arith.constant 0 : index
    %c0_22 = arith.constant 0 : index
    %c0_23 = arith.constant 0 : index
    %32 = vector.load %arg4[%c0_21, %c0_22, %c0_23] : memref<2x64x8xf32, #tpu.memory_space<vmem>>, vector<1x64x8xf32>
    %33 = vector.shape_cast %32 : vector<1x64x8xf32> to vector<64x8xf32>
    %cst_24 = arith.constant dense<0.000000e+00> : vector<2x8xf32>
    %34 = tpu.matmul %31, %33, %cst_24 {dimension_numbers = #tpu.dot_dimension_numbers<[1], [0], [0], [1], [0, 0, 1, 1], [], []>} : vector<2x64xf32>, vector<64x8xf32>, vector<2x8xf32> -> vector<2x8xf32>
    %35 = vector.broadcast %0 : vector<1x8xf32> to vector<2x8xf32>
    %36 = arith.addf %35, %34 : vector<2x8xf32>
    %c4 = arith.constant 4 : index
    %37 = memref.load %arg1[%c4] : memref<8xf32, #tpu.memory_space<smem>>
    %c0_25 = arith.constant 0 : index
    %c0_26 = arith.constant 0 : index
    %c0_27 = arith.constant 0 : index
    %c0_28 = arith.constant 0 : index
    %38 = vector.load %arg3[%c0_25, %c0_26, %c0_27, %c0_28] : memref<2x4x8x64xf32, #tpu.memory_space<vmem>>, vector<2x1x8x64xf32>
    %39 = vector.shape_cast %38 : vector<2x1x8x64xf32> to vector<2x8x64xf32>
    %40 = vector.broadcast %37 : f32 to vector<2x8x64xf32>
    %41 = arith.mulf %40, %39 : vector<2x8x64xf32>
    %c5 = arith.constant 5 : index
    %42 = memref.load %arg1[%c5] : memref<8xf32, #tpu.memory_space<smem>>
    %c0_29 = arith.constant 0 : index
    %c1_30 = arith.constant 1 : index
    %c0_31 = arith.constant 0 : index
    %c0_32 = arith.constant 0 : index
    %43 = vector.load %arg3[%c0_29, %c1_30, %c0_31, %c0_32] : memref<2x4x8x64xf32, #tpu.memory_space<vmem>>, vector<2x1x8x64xf32>
    %44 = vector.shape_cast %43 : vector<2x1x8x64xf32> to vector<2x8x64xf32>
    %45 = vector.broadcast %42 : f32 to vector<2x8x64xf32>
    %46 = arith.mulf %45, %44 : vector<2x8x64xf32>
    %47 = arith.addf %41, %46 : vector<2x8x64xf32>
    %c6 = arith.constant 6 : index
    %48 = memref.load %arg1[%c6] : memref<8xf32, #tpu.memory_space<smem>>
    %c0_33 = arith.constant 0 : index
    %c2_34 = arith.constant 2 : index
    %c0_35 = arith.constant 0 : index
    %c0_36 = arith.constant 0 : index
    %49 = vector.load %arg3[%c0_33, %c2_34, %c0_35, %c0_36] : memref<2x4x8x64xf32, #tpu.memory_space<vmem>>, vector<2x1x8x64xf32>
    %50 = vector.shape_cast %49 : vector<2x1x8x64xf32> to vector<2x8x64xf32>
    %51 = vector.broadcast %48 : f32 to vector<2x8x64xf32>
    %52 = arith.mulf %51, %50 : vector<2x8x64xf32>
    %53 = arith.addf %47, %52 : vector<2x8x64xf32>
    %c7 = arith.constant 7 : index
    %54 = memref.load %arg1[%c7] : memref<8xf32, #tpu.memory_space<smem>>
    %c0_37 = arith.constant 0 : index
    %c3_38 = arith.constant 3 : index
    %c0_39 = arith.constant 0 : index
    %c0_40 = arith.constant 0 : index
    %55 = vector.load %arg3[%c0_37, %c3_38, %c0_39, %c0_40] : memref<2x4x8x64xf32, #tpu.memory_space<vmem>>, vector<2x1x8x64xf32>
    %56 = vector.shape_cast %55 : vector<2x1x8x64xf32> to vector<2x8x64xf32>
    %57 = vector.broadcast %54 : f32 to vector<2x8x64xf32>
    %58 = arith.mulf %57, %56 : vector<2x8x64xf32>
    %59 = arith.addf %53, %58 : vector<2x8x64xf32>
    %c1_41 = arith.constant 1 : index
    %60 = memref.load %arg2[%c1_41] : memref<2xf32, #tpu.memory_space<smem>>
    %61 = vector.broadcast %60 : f32 to vector<2x8x64xf32>
    %62 = arith.addf %59, %61 : vector<2x8x64xf32>
    %cst_42 = arith.constant 0.000000e+00 : f32
    %63 = vector.broadcast %cst_42 : f32 to vector<2x8x64xf32>
    %64 = arith.maximumf %62, %63 : vector<2x8x64xf32>
    %cst_43 = arith.constant dense<0.000000e+00> : vector<2x64xf32>
    %65 = vector.multi_reduction <add>, %64, %cst_43 [1] : vector<2x8x64xf32> to vector<2x64xf32>
    %cst_44 = arith.constant 1.250000e-01 : f32
    %66 = vector.broadcast %cst_44 : f32 to vector<2x64xf32>
    %67 = arith.mulf %65, %66 : vector<2x64xf32>
    %c1_45 = arith.constant 1 : index
    %c0_46 = arith.constant 0 : index
    %c0_47 = arith.constant 0 : index
    %68 = vector.load %arg4[%c1_45, %c0_46, %c0_47] : memref<2x64x8xf32, #tpu.memory_space<vmem>>, vector<1x64x8xf32>
    %69 = vector.shape_cast %68 : vector<1x64x8xf32> to vector<64x8xf32>
    %cst_48 = arith.constant dense<0.000000e+00> : vector<2x8xf32>
    %70 = tpu.matmul %67, %69, %cst_48 {dimension_numbers = #tpu.dot_dimension_numbers<[1], [0], [0], [1], [0, 0, 1, 1], [], []>} : vector<2x64xf32>, vector<64x8xf32>, vector<2x8xf32> -> vector<2x8xf32>
    %71 = arith.addf %36, %70 : vector<2x8xf32>
    %c0_49 = arith.constant 0 : index
    %c0_50 = arith.constant 0 : index
    %72 = vector.load %arg6[%c0_49, %c0_50] : memref<2x8xf32, #tpu.memory_space<vmem>>, vector<2x8xf32>
    tpu.vector_store %arg6[%c0_49, %c0_50], %71 {strides = array<i32>} : memref<2x8xf32, #tpu.memory_space<vmem>>, vector<2x8xf32>,
    return
  }
  func.func @transform_0(%arg0: i32) -> i32 {
    %c0_i32 = arith.constant 0 : i32
    %c0_i32_0 = arith.constant 0 : i32
    return %c0_i32 : i32
  }
  func.func @transform_1(%arg0: i32) -> i32 {
    %c0_i32 = arith.constant 0 : i32
    %c0_i32_0 = arith.constant 0 : i32
    return %c0_i32 : i32
  }
  func.func @transform_2(%arg0: i32) -> (i32, i32, i32, i32) {
    %c0_i32 = arith.constant 0 : i32
    %c0_i32_0 = arith.constant 0 : i32
    %c0_i32_1 = arith.constant 0 : i32
    %c0_i32_2 = arith.constant 0 : i32
    return %arg0, %c0_i32, %c0_i32_0, %c0_i32_1 : i32, i32, i32, i32
  }
  func.func @transform_3(%arg0: i32) -> (i32, i32, i32) {
    %c0_i32 = arith.constant 0 : i32
    %c0_i32_0 = arith.constant 0 : i32
    %c0_i32_1 = arith.constant 0 : i32
    %c0_i32_2 = arith.constant 0 : i32
    return %c0_i32, %c0_i32_0, %c0_i32_1 : i32, i32, i32
  }
  func.func @transform_4(%arg0: i32) -> (i32, i32) {
    %c0_i32 = arith.constant 0 : i32
    %c0_i32_0 = arith.constant 0 : i32
    %c0_i32_1 = arith.constant 0 : i32
    return %c0_i32, %c0_i32_0 : i32, i32
  }
  func.func @transform_5(%arg0: i32) -> (i32, i32) {
    %c0_i32 = arith.constant 0 : i32
    %c0_i32_0 = arith.constant 0 : i32
    return %arg0, %c0_i32 : i32, i32
  }
}

</mosaic_0001>

<llo_original>
// kernel: tpu_custom_call.1
$region0: #{tpu_custom_call.1}
  #allocation0 [shape = 'u32[]', space=smem, size = 0x4, offset = 0x4, fixed_abs, tag = 'smem constant byte address 0x4 - core index']
  #allocation1 [shape = 'u32[144,128]{1,0:T(1,128)}', space=vmem, size = 0x12000, scoped, tag = 'internal scratch']
  %s0 = inlined_call_operand.vmem [shape: f32[8], index: 0, kind: input, shape index: {}]
  %s1 = inlined_call_operand.vmem [shape: f32[2], index: 1, kind: input, shape index: {}]
  %s2 = inlined_call_operand.vmem [shape: f32[2,4,8,64], index: 2, kind: input, shape index: {}]
  %s3 = inlined_call_operand.vmem [shape: f32[2,64,8], index: 3, kind: input, shape index: {}]
  %s4 = inlined_call_operand.vmem [shape: f32[1,8], index: 4, kind: input, shape index: {}]
  %s5 = inlined_call_operand.hbm [shape: f32[2,8], index: 5, kind: output, shape index: {}]
  %s6 = sld [smem:[#allocation0]]
  $region38: #{tpu_custom_call.1} parent=0
    _
  %s8 = ssub.s32 1, %s6
  %s9 = scalar_select 0, %s8, %s6
  $region1: #{tpu_custom_call.1} parent=0
    #allocation2 [shape = 'u8[512]{0}', space=smem, size = 0x200, scoped, tag = 'input window, operand 0, single buffered']
    #allocation3 [shape = 's32[1]{0}', space=sflag, size = 0x4, scoped, tag = 'scoped memory for tpu_custom_call.1']
    #allocation4 [shape = 's32[1]{0}', space=sflag, size = 0x4, scoped, tag = 'scoped memory for tpu_custom_call.1']
    #allocation5 [shape = 'u8[512]{0}', space=smem, size = 0x200, scoped, tag = 'input window, operand 1, single buffered']
    #allocation6 [shape = 's32[1]{0}', space=sflag, size = 0x4, scoped, tag = 'scoped memory for tpu_custom_call.1']
    #allocation7 [shape = 'u8[1024]{0}', space=vmem, size = 0x400, scoped, tag = 'output window, operand 0, single buffered']
    %10 = vsyncpa [#allocation4], 0
    %11 = vsyncpa [#allocation6], 0
    %12 = vsyncpa [#allocation3], 0
    // Predicated region
    $region2: #{tpu_custom_call.1} parent=1 // pred_check
      _
    $region3: #{tpu_custom_call.1} parent=1 // pred_check_branch
      %14 = sbr.rel (0) target = $region5
    $region4: #{tpu_custom_call.1} parent=1 // pred_region
      %s16 = ssub.s32 16, 16
      %17 = vsyncadd [#allocation4], %s16
      %s19 = sshll.u32 %s0, 4
      %s20 = int_to_ptr.vmem [resolvable:$true] %s19
      %22 = dma.vmem_to_smem %s20, 16, [#allocation2], [#allocation4]
    $region5: #{tpu_custom_call.1} parent=1 // pred_fallthru
      _
    // Predicated region
    $region6: #{tpu_custom_call.1} parent=1 // pred_check
      _
    $region7: #{tpu_custom_call.1} parent=1 // pred_check_branch
      %24 = sbr.rel (0) target = $region9
    $region8: #{tpu_custom_call.1} parent=1 // pred_region
      %s26 = ssub.s32 16, 16
      %27 = vsyncadd [#allocation6], %s26
      %s29 = sshll.u32 %s1, 4
      %s30 = int_to_ptr.vmem [resolvable:$true] %s29
      %32 = dma.vmem_to_smem %s30, 16, [#allocation5], [#allocation6]
    $region9: #{tpu_custom_call.1} parent=1 // pred_fallthru
      _
    // Predicated region
    $region10: #{tpu_custom_call.1} parent=1 // pred_check
      _
    $region11: #{tpu_custom_call.1} parent=1 // pred_check_branch
      %34 = sbr.rel (0) target = $region13
    $region12: #{tpu_custom_call.1} parent=1 // pred_region
      _
    $region13: #{tpu_custom_call.1} parent=1 // pred_fallthru
      _
    // Predicated region
    $region14: #{tpu_custom_call.1} parent=1 // pred_check
      _
    $region15: #{tpu_custom_call.1} parent=1 // pred_check_branch
      %36 = sbr.rel (0) target = $region17
    $region16: #{tpu_custom_call.1} parent=1 // pred_region
      _
    $region17: #{tpu_custom_call.1} parent=1 // pred_fallthru
      _
    // Predicated region
    $region18: #{tpu_custom_call.1} parent=1 // pred_check
      _
    $region19: #{tpu_custom_call.1} parent=1 // pred_check_branch
      %38 = sbr.rel (0) target = $region21
    $region20: #{tpu_custom_call.1} parent=1 // pred_region
      _
    $region21: #{tpu_custom_call.1} parent=1 // pred_fallthru
      _
    // Predicated region
    $region22: #{tpu_custom_call.1} parent=1 // pred_check
      _
    $region23: #{tpu_custom_call.1} parent=1 // pred_check_branch
      %40 = sbr.rel (0) target = $region25
    $region24: #{tpu_custom_call.1} parent=1 // pred_region
      %41 = dma.done [#allocation4], 16
    $region25: #{tpu_custom_call.1} parent=1 // pred_fallthru
      _
    // Predicated region
    $region26: #{tpu_custom_call.1} parent=1 // pred_check
      _
    $region27: #{tpu_custom_call.1} parent=1 // pred_check_branch
      %43 = sbr.rel (0) target = $region29
    $region28: #{tpu_custom_call.1} parent=1 // pred_region
      %44 = dma.done [#allocation6], 16
    $region29: #{tpu_custom_call.1} parent=1 // pred_fallthru
      _
    %45 = sfence
    %v46 = vld [vmem:[%s4] sm:$0x1]
    %s47 = sld [smem:[#allocation2]]
    %v48 = vld [vmem:[%s2] sm:$0xff]
    %v49 = vld [vmem:[%s2 + $0x20] sm:$0xff]
    %v50 = vstv %s47
    %v51 = vmul.f32 %v50, %v48
    %v52 = vmul.f32 %v50, %v49
    %s53 = sld [smem:[#allocation2 + $0x1]]
    %s54 = scalar_lea.vmem %s2, 8
    %v55 = vld [vmem:[%s54] sm:$0xff]
    %v56 = vld [vmem:[%s54 + $0x20] sm:$0xff]
    %v57 = vstv %s53
    %v58 = vmul.f32 %v57, %v55
    %v59 = vmul.f32 %v57, %v56
    %v60 = vadd.f32 %v51, %v58
    %v61 = vadd.f32 %v52, %v59
    %s62 = sld [smem:[#allocation2 + $0x2]]
    %s63 = scalar_lea.vmem %s2, 16
    %v64 = vld [vmem:[%s63] sm:$0xff]
    %v65 = vld [vmem:[%s63 + $0x20] sm:$0xff]
    %v66 = vstv %s62
    %v67 = vmul.f32 %v66, %v64
    %v68 = vmul.f32 %v66, %v65
    %v69 = vadd.f32 %v60, %v67
    %v70 = vadd.f32 %v61, %v68
    %s71 = sld [smem:[#allocation2 + $0x3]]
    %s72 = scalar_lea.vmem %s2, 24
    %v73 = vld [vmem:[%s72] sm:$0xff]
    %v74 = vld [vmem:[%s72 + $0x20] sm:$0xff]
    %v75 = vstv %s71
    %v76 = vmul.f32 %v75, %v73
    %v77 = vmul.f32 %v75, %v74
    %v78 = vadd.f32 %v69, %v76
    %v79 = vadd.f32 %v70, %v77
    %s80 = sld [smem:[#allocation5]]
    %v81 = vstv %s80
    %v82 = vadd.f32 %v78, %v81
    %v83 = vadd.f32 %v79, %v81
    %v84 = vmax.f32 %v82, 0.0
    %v85 = vmax.f32 %v83, 0.0
    %vm86 = vcmask 523264
    %v87 = vsel %vm86, %v84, 0.0
    %v88 = vrot.slane %v87, 4
    %v89 = vadd.f32 %v87, %v88
    %v90 = vrot.slane %v89, 2
    %v91 = vadd.f32 %v89, %v90
    %v92 = vrot.slane %v91, 1
    %v93 = vadd.f32 %v91, %v92
    %v94 = vsel %vm86, %v85, 0.0
    %v95 = vrot.slane %v94, 4
    %v96 = vadd.f32 %v94, %v95
    %v97 = vrot.slane %v96, 2
    %v98 = vadd.f32 %v96, %v97
    %v99 = vrot.slane %v98, 1
    %v100 = vadd.f32 %v98, %v99
    %v101 = vmul.f32 %v93, 0.125
    %v102 = vmul.f32 %v100, 0.125
    %v103 = vld [vmem:[%s3] sm:$0xff]
    %v104 = vld [vmem:[%s3 + $0x8] sm:$0xff]
    %v105 = vld [vmem:[%s3 + $0x10] sm:$0xff]
    %v106 = vld [vmem:[%s3 + $0x18] sm:$0xff]
    %v107 = vld [vmem:[%s3 + $0x20] sm:$0xff]
    %v108 = vld [vmem:[%s3 + $0x28] sm:$0xff]
    %v109 = vld [vmem:[%s3 + $0x30] sm:$0xff]
    %v110 = vld [vmem:[%s3 + $0x38] sm:$0xff]
    %vm113 = vcmask 1041409
    %v114 = vsel %vm113, %v102, %v101
    %v115 = vsel %vm86, %v114, 0
    %117 = vmatprep.subr.mxu0 0.0
    %118 = vmatpush1.msra.mxu0 %v103
    %119 = vmatprep.subr.mxu0 0.0
    %120 = vmatpush1.msra.mxu0 %v104
    %121 = vmatprep.subr.mxu0 0.0
    %122 = vmatpush1.msra.mxu0 %v105
    %123 = vmatprep.subr.mxu0 0.0
    %124 = vmatpush1.msra.mxu0 %v106
    %125 = vmatprep.subr.mxu0 0.0
    %126 = vmatpush1.msra.mxu0 %v107
    %127 = vmatprep.subr.mxu0 0.0
    %128 = vmatpush1.msra.mxu0 %v108
    %129 = vmatprep.subr.mxu0 0.0
    %130 = vmatpush1.msra.mxu0 %v109
    %131 = vmatprep.subr.mxu0 0.0
    %132 = vmatpush1.msra.mxu0 %v110
    %133 = vmatprep.subr.mxu0 0.0
    %134 = vmatpush1.msra.mxu0 0.0
    %135 = vmatprep.subr.mxu0 0.0
    %136 = vmatpush1.msra.mxu0 0.0
    %137 = vmatprep.subr.mxu0 0.0
    %138 = vmatpush1.msra.mxu0 0.0
    %139 = vmatprep.subr.mxu0 0.0
    %140 = vmatpush1.msra.mxu0 0.0
    %141 = vmatprep.subr.mxu0 0.0
    %142 = vmatpush1.msra.mxu0 0.0
    %143 = vmatprep.subr.mxu0 0.0
    %144 = vmatpush1.msra.mxu0 0.0
    %145 = vmatprep.subr.mxu0 0.0
    %146 = vmatpush1.msra.mxu0 0.0
    %147 = vmatprep.subr.mxu0 0.0
    %148 = vmatpush1.msra.mxu0 0.0
    %149 = vmatprep.subr.mxu0 0.0
    %150 = vmatpush1.msra.mxu0 0.0
    %151 = vmatprep.subr.mxu0 0.0
    %152 = vmatpush1.msra.mxu0 0.0
    %153 = vmatprep.subr.mxu0 0.0
    %154 = vmatpush1.msra.mxu0 0.0
    %155 = vmatprep.subr.mxu0 0.0
    %156 = vmatpush1.msra.mxu0 0.0
    %157 = vmatprep.subr.mxu0 0.0
    %158 = vmatpush1.msra.mxu0 0.0
    %159 = vmatprep.subr.mxu0 0.0
    %160 = vmatpush1.msra.mxu0 0.0
    %161 = vmatprep.subr.mxu0 0.0
    %162 = vmatpush1.msra.mxu0 0.0
    %163 = vmatprep.subr.mxu0 0.0
    %164 = vmatpush1.msra.mxu0 0.0
    %165 = vmatprep.subr.mxu0 0.0
    %166 = vmatpush1.msra.mxu0 0.0
    %167 = vmatprep.subr.mxu0 0.0
    %168 = vmatpush1.msra.mxu0 0.0
    %169 = vmatprep.subr.mxu0 0.0
    %170 = vmatpush1.msra.mxu0 0.0
    %171 = vmatprep.subr.mxu0 0.0
    %172 = vmatpush1.msra.mxu0 0.0
    %173 = vmatprep.subr.mxu0 0.0
    %174 = vmatpush1.msra.mxu0 0.0
    %175 = vmatprep.subr.mxu0 0.0
    %176 = vmatpush1.msra.mxu0 0.0
    %177 = vmatprep.subr.mxu0 0.0
    %178 = vmatpush1.msra.mxu0 0.0
    %179 = vmatprep.subr.mxu0 0.0
    %180 = vmatpush1.msra.mxu0 0.0
    %181 = vmatprep.mubr.f32.mxu0 0.0
    %182 = vmatmul.mubr.f32.gmra.mrb[0].mxu0 %v115
    %v183 = vpop.f32.mrb[0].mxu0
    %v184 = vadd.f32 0.0, %v183
    %v185 = vpop.f32.mrb[0].mxu0
    %186 = vdwg.mxu0
    %v188 = vlaneseq
    %v189 = vshrl.u32 %v188, 7
    %v190 = vsub.s32 0, %v189
    %v191 = vrot.slane %v46, %v190
    %v193 = vadd.f32 %v191, %v184
    %s194 = sld [smem:[#allocation2 + $0x4]]
    %v195 = vstv %s194
    %v196 = vmul.f32 %v195, %v48
    %v197 = vmul.f32 %v195, %v49
    %s198 = sld [smem:[#allocation2 + $0x5]]
    %v199 = vstv %s198
    %v200 = vmul.f32 %v199, %v55
    %v201 = vmul.f32 %v199, %v56
    %v202 = vadd.f32 %v196, %v200
    %v203 = vadd.f32 %v197, %v201
    %s204 = sld [smem:[#allocation2 + $0x6]]
    %v205 = vstv %s204
    %v206 = vmul.f32 %v205, %v64
    %v207 = vmul.f32 %v205, %v65
    %v208 = vadd.f32 %v202, %v206
    %v209 = vadd.f32 %v203, %v207
    %s210 = sld [smem:[#allocation2 + $0x7]]
    %v211 = vstv %s210
    %v212 = vmul.f32 %v211, %v73
    %v213 = vmul.f32 %v211, %v74
    %v214 = vadd.f32 %v208, %v212
    %v215 = vadd.f32 %v209, %v213
    %s216 = sld [smem:[#allocation5 + $0x1]]
    %v217 = vstv %s216
    %v218 = vadd.f32 %v214, %v217
    %v219 = vadd.f32 %v215, %v217
    %v220 = vmax.f32 %v218, 0.0
    %v221 = vmax.f32 %v219, 0.0
    %v222 = vsel %vm86, %v220, 0.0
    %v223 = vrot.slane %v222, 4
    %v224 = vadd.f32 %v222, %v223
    %v225 = vrot.slane %v224, 2
    %v226 = vadd.f32 %v224, %v225
    %v227 = vrot.slane %v226, 1
    %v228 = vadd.f32 %v226, %v227
    %v229 = vsel %vm86, %v221, 0.0
    %v230 = vrot.slane %v229, 4
    %v231 = vadd.f32 %v229, %v230
    %v232 = vrot.slane %v231, 2
    %v233 = vadd.f32 %v231, %v232
    %v234 = vrot.slane %v233, 1
    %v235 = vadd.f32 %v233, %v234
    %v236 = vmul.f32 %v228, 0.125
    %v237 = vmul.f32 %v235, 0.125
    %s238 = scalar_lea.vmem %s3, 64
    %v239 = vld [vmem:[%s238] sm:$0xff]
    %v240 = vld [vmem:[%s238 + $0x8] sm:$0xff]
    %v241 = vld [vmem:[%s238 + $0x10] sm:$0xff]
    %v242 = vld [vmem:[%s238 + $0x18] sm:$0xff]
    %v243 = vld [vmem:[%s238 + $0x20] sm:$0xff]
    %v244 = vld [vmem:[%s238 + $0x28] sm:$0xff]
    %v245 = vld [vmem:[%s238 + $0x30] sm:$0xff]
    %v246 = vld [vmem:[%s238 + $0x38] sm:$0xff]
    %v249 = vsel %vm113, %v237, %v236
    %v250 = vsel %vm86, %v249, 0
    %252 = vmatprep.subr.mxu0 0.0
    %253 = vmatpush1.msra.mxu0 %v239
    %254 = vmatprep.subr.mxu0 0.0
    %255 = vmatpush1.msra.mxu0 %v240
    %256 = vmatprep.subr.mxu0 0.0
    %257 = vmatpush1.msra.mxu0 %v241
    %258 = vmatprep.subr.mxu0 0.0
    %259 = vmatpush1.msra.mxu0 %v242
    %260 = vmatprep.subr.mxu0 0.0
    %261 = vmatpush1.msra.mxu0 %v243
    %262 = vmatprep.subr.mxu0 0.0
    %263 = vmatpush1.msra.mxu0 %v244
    %264 = vmatprep.subr.mxu0 0.0
    %265 = vmatpush1.msra.mxu0 %v245
    %266 = vmatprep.subr.mxu0 0.0
    %267 = vmatpush1.msra.mxu0 %v246
    %268 = vmatprep.subr.mxu0 0.0
    %269 = vmatpush1.msra.mxu0 0.0
    %270 = vmatprep.subr.mxu0 0.0
    %271 = vmatpush1.msra.mxu0 0.0
    %272 = vmatprep.subr.mxu0 0.0
    %273 = vmatpush1.msra.mxu0 0.0
    %274 = vmatprep.subr.mxu0 0.0
    %275 = vmatpush1.msra.mxu0 0.0
    %276 = vmatprep.subr.mxu0 0.0
    %277 = vmatpush1.msra.mxu0 0.0
    %278 = vmatprep.subr.mxu0 0.0
    %279 = vmatpush1.msra.mxu0 0.0
    %280 = vmatprep.subr.mxu0 0.0
    %281 = vmatpush1.msra.mxu0 0.0
    %282 = vmatprep.subr.mxu0 0.0
    %283 = vmatpush1.msra.mxu0 0.0
    %284 = vmatprep.subr.mxu0 0.0
    %285 = vmatpush1.msra.mxu0 0.0
    %286 = vmatprep.subr.mxu0 0.0
    %287 = vmatpush1.msra.mxu0 0.0
    %288 = vmatprep.subr.mxu0 0.0
    %289 = vmatpush1.msra.mxu0 0.0
    %290 = vmatprep.subr.mxu0 0.0
    %291 = vmatpush1.msra.mxu0 0.0
    %292 = vmatprep.subr.mxu0 0.0
    %293 = vmatpush1.msra.mxu0 0.0
    %294 = vmatprep.subr.mxu0 0.0
    %295 = vmatpush1.msra.mxu0 0.0
    %296 = vmatprep.subr.mxu0 0.0
    %297 = vmatpush1.msra.mxu0 0.0
    %298 = vmatprep.subr.mxu0 0.0
    %299 = vmatpush1.msra.mxu0 0.0
    %300 = vmatprep.subr.mxu0 0.0
    %301 = vmatpush1.msra.mxu0 0.0
    %302 = vmatprep.subr.mxu0 0.0
    %303 = vmatpush1.msra.mxu0 0.0
    %304 = vmatprep.subr.mxu0 0.0
    %305 = vmatpush1.msra.mxu0 0.0
    %306 = vmatprep.subr.mxu0 0.0
    %307 = vmatpush1.msra.mxu0 0.0
    %308 = vmatprep.subr.mxu0 0.0
    %309 = vmatpush1.msra.mxu0 0.0
    %310 = vmatprep.subr.mxu0 0.0
    %311 = vmatpush1.msra.mxu0 0.0
    %312 = vmatprep.subr.mxu0 0.0
    %313 = vmatpush1.msra.mxu0 0.0
    %314 = vmatprep.subr.mxu0 0.0
    %315 = vmatpush1.msra.mxu0 0.0
    %316 = vmatprep.mubr.f32.mxu0 0.0
    %317 = vmatmul.mubr.f32.gmra.mrb[0].mxu0 %v250
    %v318 = vpop.f32.mrb[0].mxu0
    %v319 = vadd.f32 0.0, %v318
    %v320 = vpop.f32.mrb[0].mxu0
    %321 = vdwg.mxu0
    %v322 = vadd.f32 %v193, %v319
    %vm323 = vcmask 58368
    %324 = vst.msk [vmem:[#allocation7] sm:$0x3] %vm323, %v322
    // Predicated region
    $region30: #{tpu_custom_call.1} parent=1 // pred_check
      _
    $region31: #{tpu_custom_call.1} parent=1 // pred_check_branch
      %326 = sbr.rel (0) target = $region33
    $region32: #{tpu_custom_call.1} parent=1 // pred_region
      %s328 = ssub.s32 32, 32
      %329 = vsyncadd [#allocation3], %s328
      %s331 = sshll.u32 [#allocation7], 4
      %s332 = int_to_ptr.vmem [resolvable:$true] %s331
      %334 = dma.vmem_to_hbm [thread:$0]  %s332, 32, %s5, [#allocation3]
    $region33: #{tpu_custom_call.1} parent=1 // pred_fallthru
      _
    // Predicated region
    $region34: #{tpu_custom_call.1} parent=1 // pred_check
      _
    $region35: #{tpu_custom_call.1} parent=1 // pred_check_branch
      %336 = sbr.rel (0) target = $region37
    $region36: #{tpu_custom_call.1} parent=1 // pred_region
      %337 = dma.done [#allocation3], 32
    $region37: #{tpu_custom_call.1} parent=1 // pred_fallthru
      _
    %338 = vsyncpa [#allocation3], 1
    %339 = vsyncpa [#allocation4], 1
    %340 = vsyncpa [#allocation6], 1

</llo_original>
